<compile_context>
chip_gen: v7x
topology: tpu7x:2x2x1
jax: 0.10.0
libtpu: 0.0.40
codegen_flags: <defaults>
</compile_context>

<pallas_src>
import functools

import jax
import jax.numpy as jnp
from jax.experimental import pallas as pl
from jax.experimental.pallas import tpu as pltpu

HIDDEN = 256
PAD_IN = 128      # state_dim padded up to one full lane width
HEAD_PAD = 128    # fused head output padded to one full lane width


# ----------------------------------------------------------------------------
# Kernel
# ----------------------------------------------------------------------------
def _dueling_kernel(action_dim,
                    state_ref, w1_ref, b1_ref, w2_ref, b2_ref,
                    ws_ref, bs_ref, wh_ref, bh_ref, q_ref):
    """One batch tile of the full dueling-DQN forward pass."""
    x = state_ref[...]                                               # (TB, 128) bf16

    # fc1 -> relu
    h = jnp.dot(x, w1_ref[...], preferred_element_type=jnp.float32) + b1_ref[...]
    h = jnp.maximum(h, 0.0).astype(jnp.bfloat16)                     # (TB, 256)

    # fc2 -> relu
    h = jnp.dot(h, w2_ref[...], preferred_element_type=jnp.float32) + b2_ref[...]
    h = jnp.maximum(h, 0.0).astype(jnp.bfloat16)                     # (TB, 256)

    # fused fc_value | fc_advantage: one (256, 512) matmul, then relu
    s = jnp.dot(h, ws_ref[...], preferred_element_type=jnp.float32) + bs_ref[...]
    s = jnp.maximum(s, 0.0).astype(jnp.bfloat16)                     # (TB, 512)

    # fused heads: block-diagonal (512, 128) matmul, lane-dense result tile.
    #   column 0       -> value
    #   columns 1..A   -> advantage
    #   columns A+1..  -> exact zeros (zero weight rows / zero bias)
    head = jnp.dot(s, wh_ref[...], preferred_element_type=jnp.float32) + bh_ref[...]

    v = head[:, 0:1]                                                 # (TB, 1)
    a = head[:, 1:1 + action_dim]                                    # (TB, A)
    # Padded columns are exactly zero, so sum(head) - v == sum over the real
    # advantage columns; divide by the *real* action_dim only.
    a_mean = (jnp.sum(head, axis=1, keepdims=True) - v) * (1.0 / action_dim)

    q_ref[...] = (v + (a - a_mean)).astype(q_ref.dtype)


# ----------------------------------------------------------------------------
# Wrapper
# ----------------------------------------------------------------------------
def _pick_tile_b(batch):
    # Largest power-of-two tile (<= 512) dividing the batch; 512 keeps
    # double-buffered activations tiny even against v7x's 64 MiB VMEM.
    for cand in (512, 256, 128, 64, 32, 16, 8):
        if batch % cand == 0:
            return cand
    return batch  # odd / tiny batch: single whole-array tile


def prepare_params(p, state_dim, action_dim, hidden=HIDDEN):
    """Pad / fuse PyTorch-Linear-style params into the kernel layout.

    p holds pre-transposed (in, out) weights and (1, out) biases in f32.
    Returns bf16 weights (f32 biases) in the fused layout the kernel expects.
    """
    # fc1: pad the input-feature rows up to 128 with zeros.
    w1 = jnp.zeros((PAD_IN, hidden), jnp.float32).at[:state_dim, :].set(p["w1"])

    # fused value/advantage hidden layers: (256, 512), (1, 512)
    ws = jnp.concatenate([p["wv"], p["wa"]], axis=1)
    bs = jnp.concatenate([p["bv"], p["ba"]], axis=1)

    # fused heads: block-diagonal (512, 128), (1, 128); unused columns zero.
    wh = jnp.zeros((2 * hidden, HEAD_PAD), jnp.float32)
    wh = wh.at[:hidden, 0:1].set(p["wval"])
    wh = wh.at[hidden:, 1:1 + action_dim].set(p["wadv"])
    bh = jnp.zeros((1, HEAD_PAD), jnp.float32)
    bh = bh.at[:, 0:1].set(p["bval"]).at[:, 1:1 + action_dim].set(p["badv"])

    bf16 = lambda w: w.astype(jnp.bfloat16)
    return dict(w1=bf16(w1), b1=p["b1"],
                w2=bf16(p["w2"]), b2=p["b2"],
                ws=bf16(ws), bs=bs,
                wh=bf16(wh), bh=bh)


def dueling_dqn_forward(state, fused, action_dim, hidden=HIDDEN):
    """state: (B, state_dim) f32; fused: output of prepare_params()."""
    batch, state_dim = state.shape
    assert state_dim <= PAD_IN

    # Zero-pad features to a full 128-lane extent; activations in bf16.
    x = jnp.zeros((batch, PAD_IN), jnp.bfloat16).at[:, :state_dim].set(
        state.astype(jnp.bfloat16))

    tile_b = _pick_tile_b(batch)
    grid = (batch // tile_b,)

    def resident(shape):
        # Weight blocks: same block for every grid step -> stay VMEM-resident.
        return pl.BlockSpec(shape, lambda i: (0, 0))

    in_specs = [
        pl.BlockSpec((tile_b, PAD_IN), lambda i: (i, 0)),            # state tile
        resident((PAD_IN, hidden)), resident((1, hidden)),           # w1, b1
        resident((hidden, hidden)), resident((1, hidden)),           # w2, b2
        resident((hidden, 2 * hidden)), resident((1, 2 * hidden)),   # ws, bs
        resident((2 * hidden, HEAD_PAD)), resident((1, HEAD_PAD)),   # wh, bh
    ]
    out_specs = pl.BlockSpec((tile_b, action_dim), lambda i: (i, 0))

    kernel = functools.partial(_dueling_kernel, action_dim)
    return pl.pallas_call(
        kernel,
        out_shape=jax.ShapeDtypeStruct((batch, action_dim), jnp.float32),
        grid=grid,
        in_specs=in_specs,
        out_specs=out_specs,
        compiler_params=pltpu.CompilerParams(
            dimension_semantics=("parallel",)),   # shards batch over v7x's 2 TCs
    )(x, fused["w1"], fused["b1"], fused["w2"], fused["b2"],
      fused["ws"], fused["bs"], fused["wh"], fused["bh"])


# ----------------------------------------------------------------------------
# Params / reference
# ----------------------------------------------------------------------------
def init_params(key, state_dim, action_dim, hidden=HIDDEN):
    """Deterministic synthetic init (PyTorch-Linear shapes, stored transposed, f32)."""
    keys = jax.random.split(key, 12)

    def linear(kw, kb, fan_in, fan_out):
        bound = 1.0 / jnp.sqrt(fan_in)
        w = jax.random.uniform(kw, (fan_in, fan_out), jnp.float32, -bound, bound)
        b = jax.random.uniform(kb, (1, fan_out), jnp.float32, -bound, bound)
        return w, b

    w1, b1 = linear(keys[0], keys[1], state_dim, hidden)
    w2, b2 = linear(keys[2], keys[3], hidden, hidden)
    wv, bv = linear(keys[4], keys[5], hidden, hidden)
    wval, bval = linear(keys[6], keys[7], hidden, 1)
    wa, ba = linear(keys[8], keys[9], hidden, hidden)
    wadv, badv = linear(keys[10], keys[11], hidden, action_dim)
    return dict(w1=w1, b1=b1, w2=w2, b2=b2, wv=wv, bv=bv,
                wval=wval, bval=bval, wa=wa, ba=ba, wadv=wadv, badv=badv)


def reference_forward(state, p):
    """Pure-JAX reference emulating the kernel's bf16-weight / f32-accumulate path."""
    bf = lambda z: z.astype(jnp.bfloat16)
    dot = lambda a, b: jnp.dot(bf(a), bf(b), preferred_element_type=jnp.float32)
    relu = lambda z: jnp.maximum(z, 0.0)
    h = relu(dot(state, p["w1"]) + p["b1"])
    h = relu(dot(h, p["w2"]) + p["b2"])
    v = dot(relu(dot(h, p["wv"]) + p["bv"]), p["wval"]) + p["bval"]
    a = dot(relu(dot(h, p["wa"]) + p["ba"]), p["wadv"]) + p["badv"]
    return v + (a - jnp.mean(a, axis=1, keepdims=True))


# ----------------------------------------------------------------------------
# Main
# ----------------------------------------------------------------------------
if __name__ == "__main__":
    key = jax.random.PRNGKey(0)
    k_state, k_params = jax.random.split(key)

    batch, state_dim, action_dim = 8, 16, 4
    state = jax.random.normal(k_state, (batch, state_dim), jnp.float32)
    params = init_params(k_params, state_dim, action_dim)
    fused = prepare_params(params, state_dim, action_dim)

    q = dueling_dqn_forward(state, fused, action_dim)
    q = jax.block_until_ready(q)

    q_ref = reference_forward(state, params)
    assert q.shape == (batch, action_dim)
    # bf16 weights/activations -> relaxed tolerance vs the emulated reference.
    assert jnp.allclose(q, q_ref, atol=1e-2, rtol=1e-2), \
        float(jnp.max(jnp.abs(q - q_ref)))

    print("KERNEL_OK")
</pallas_src>

<mosaic_0001>
module attributes {stable_mosaic.version = 11 : i64} {
  func.func @_dueling_kernel(%arg0: i32, %arg1: memref<8x128xbf16, #tpu.memory_space<vmem>>, %arg2: memref<128x256xbf16, #tpu.memory_space<vmem>>, %arg3: memref<1x256xf32, #tpu.memory_space<vmem>>, %arg4: memref<256x256xbf16, #tpu.memory_space<vmem>>, %arg5: memref<1x256xf32, #tpu.memory_space<vmem>>, %arg6: memref<256x512xbf16, #tpu.memory_space<vmem>>, %arg7: memref<1x512xf32, #tpu.memory_space<vmem>>, %arg8: memref<512x128xbf16, #tpu.memory_space<vmem>>, %arg9: memref<1x128xf32, #tpu.memory_space<vmem>>, %arg10: memref<8x4xf32, #tpu.memory_space<vmem>>) attributes {dimension_semantics = [#tpu.dimension_semantics<parallel>], iteration_bounds = array<i64: 1>, scalar_prefetch = 0 : i64, scratch_operands = 0 : i64, tpu.core_type = #tpu.core_type<tc>, window_params = [{transform_indices = @transform_0, window_bounds = array<i64: 8, 128>}, {pipeline_mode = #tpu.pipeline_mode<synchronous>, transform_indices = @transform_1, window_bounds = array<i64: 128, 256>}, {pipeline_mode = #tpu.pipeline_mode<synchronous>, transform_indices = @transform_2, window_bounds = array<i64: 1, 256>}, {pipeline_mode = #tpu.pipeline_mode<synchronous>, transform_indices = @transform_3, window_bounds = array<i64: 256, 256>}, {pipeline_mode = #tpu.pipeline_mode<synchronous>, transform_indices = @transform_4, window_bounds = array<i64: 1, 256>}, {pipeline_mode = #tpu.pipeline_mode<synchronous>, transform_indices = @transform_5, window_bounds = array<i64: 256, 512>}, {pipeline_mode = #tpu.pipeline_mode<synchronous>, transform_indices = @transform_6, window_bounds = array<i64: 1, 512>}, {pipeline_mode = #tpu.pipeline_mode<synchronous>, transform_indices = @transform_7, window_bounds = array<i64: 512, 128>}, {pipeline_mode = #tpu.pipeline_mode<synchronous>, transform_indices = @transform_8, window_bounds = array<i64: 1, 128>}, {transform_indices = @transform_9, window_bounds = array<i64: 8, 4>}]} {
    %c0 = arith.constant 0 : index
    %c0_0 = arith.constant 0 : index
    %0 = vector.load %arg1[%c0, %c0_0] : memref<8x128xbf16, #tpu.memory_space<vmem>>, vector<8x128xbf16>
    %c0_1 = arith.constant 0 : index
    %c0_2 = arith.constant 0 : index
    %1 = vector.load %arg2[%c0_1, %c0_2] : memref<128x256xbf16, #tpu.memory_space<vmem>>, vector<128x256xbf16>
    %cst = arith.constant dense<0.000000e+00> : vector<8x256xf32>
    %2 = tpu.matmul %0, %1, %cst {dimension_numbers = #tpu.dot_dimension_numbers<[1], [0], [0], [1], [0, 0, 1, 1], [], []>} : vector<8x128xbf16>, vector<128x256xbf16>, vector<8x256xf32> -> vector<8x256xf32>
    %c0_3 = arith.constant 0 : index
    %c0_4 = arith.constant 0 : index
    %3 = vector.load %arg3[%c0_3, %c0_4] : memref<1x256xf32, #tpu.memory_space<vmem>>, vector<1x256xf32>
    %4 = vector.broadcast %3 : vector<1x256xf32> to vector<8x256xf32>
    %5 = arith.addf %2, %4 : vector<8x256xf32>
    %cst_5 = arith.constant 0.000000e+00 : f32
    %6 = vector.broadcast %cst_5 : f32 to vector<8x256xf32>
    %7 = arith.maximumf %5, %6 : vector<8x256xf32>
    %8 = arith.truncf %7 : vector<8x256xf32> to vector<8x256xbf16>
    %c0_6 = arith.constant 0 : index
    %c0_7 = arith.constant 0 : index
    %9 = vector.load %arg4[%c0_6, %c0_7] : memref<256x256xbf16, #tpu.memory_space<vmem>>, vector<256x256xbf16>
    %cst_8 = arith.constant dense<0.000000e+00> : vector<8x256xf32>
    %10 = tpu.matmul %8, %9, %cst_8 {dimension_numbers = #tpu.dot_dimension_numbers<[1], [0], [0], [1], [0, 0, 1, 1], [], []>} : vector<8x256xbf16>, vector<256x256xbf16>, vector<8x256xf32> -> vector<8x256xf32>
    %c0_9 = arith.constant 0 : index
    %c0_10 = arith.constant 0 : index
    %11 = vector.load %arg5[%c0_9, %c0_10] : memref<1x256xf32, #tpu.memory_space<vmem>>, vector<1x256xf32>
    %12 = vector.broadcast %11 : vector<1x256xf32> to vector<8x256xf32>
    %13 = arith.addf %10, %12 : vector<8x256xf32>
    %cst_11 = arith.constant 0.000000e+00 : f32
    %14 = vector.broadcast %cst_11 : f32 to vector<8x256xf32>
    %15 = arith.maximumf %13, %14 : vector<8x256xf32>
    %16 = arith.truncf %15 : vector<8x256xf32> to vector<8x256xbf16>
    %c0_12 = arith.constant 0 : index
    %c0_13 = arith.constant 0 : index
    %17 = vector.load %arg6[%c0_12, %c0_13] : memref<256x512xbf16, #tpu.memory_space<vmem>>, vector<256x512xbf16>
    %cst_14 = arith.constant dense<0.000000e+00> : vector<8x512xf32>
    %18 = tpu.matmul %16, %17, %cst_14 {dimension_numbers = #tpu.dot_dimension_numbers<[1], [0], [0], [1], [0, 0, 1, 1], [], []>} : vector<8x256xbf16>, vector<256x512xbf16>, vector<8x512xf32> -> vector<8x512xf32>
    %c0_15 = arith.constant 0 : index
    %c0_16 = arith.constant 0 : index
    %19 = vector.load %arg7[%c0_15, %c0_16] : memref<1x512xf32, #tpu.memory_space<vmem>>, vector<1x512xf32>
    %20 = vector.broadcast %19 : vector<1x512xf32> to vector<8x512xf32>
    %21 = arith.addf %18, %20 : vector<8x512xf32>
    %cst_17 = arith.constant 0.000000e+00 : f32
    %22 = vector.broadcast %cst_17 : f32 to vector<8x512xf32>
    %23 = arith.maximumf %21, %22 : vector<8x512xf32>
    %24 = arith.truncf %23 : vector<8x512xf32> to vector<8x512xbf16>
    %c0_18 = arith.constant 0 : index
    %c0_19 = arith.constant 0 : index
    %25 = vector.load %arg8[%c0_18, %c0_19] : memref<512x128xbf16, #tpu.memory_space<vmem>>, vector<512x128xbf16>
    %cst_20 = arith.constant dense<0.000000e+00> : vector<8x128xf32>
    %26 = tpu.matmul %24, %25, %cst_20 {dimension_numbers = #tpu.dot_dimension_numbers<[1], [0], [0], [1], [0, 0, 1, 1], [], []>} : vector<8x512xbf16>, vector<512x128xbf16>, vector<8x128xf32> -> vector<8x128xf32>
    %c0_21 = arith.constant 0 : index
    %c0_22 = arith.constant 0 : index
    %27 = vector.load %arg9[%c0_21, %c0_22] : memref<1x128xf32, #tpu.memory_space<vmem>>, vector<1x128xf32>
    %28 = vector.broadcast %27 : vector<1x128xf32> to vector<8x128xf32>
    %29 = arith.addf %26, %28 : vector<8x128xf32>
    %30 = vector.extract_strided_slice %29 {offsets = [0, 0], sizes = [8, 1], strides = [1, 1]} : vector<8x128xf32> to vector<8x1xf32>
    %31 = vector.extract_strided_slice %29 {offsets = [0, 1], sizes = [8, 4], strides = [1, 1]} : vector<8x128xf32> to vector<8x4xf32>
    %cst_23 = arith.constant dense<0.000000e+00> : vector<8xf32>
    %32 = vector.multi_reduction <add>, %29, %cst_23 [1] : vector<8x128xf32> to vector<8xf32>
    %33 = vector.shape_cast %32 : vector<8xf32> to vector<8x1xf32>
    %34 = arith.subf %33, %30 : vector<8x1xf32>
    %cst_24 = arith.constant 2.500000e-01 : f32
    %35 = vector.broadcast %cst_24 : f32 to vector<8x1xf32>
    %36 = arith.mulf %34, %35 : vector<8x1xf32>
    %37 = vector.broadcast %36 : vector<8x1xf32> to vector<8x4xf32>
    %38 = arith.subf %31, %37 : vector<8x4xf32>
    %39 = vector.broadcast %30 : vector<8x1xf32> to vector<8x4xf32>
    %40 = arith.addf %39, %38 : vector<8x4xf32>
    %c0_25 = arith.constant 0 : index
    %c0_26 = arith.constant 0 : index
    %41 = vector.load %arg10[%c0_25, %c0_26] : memref<8x4xf32, #tpu.memory_space<vmem>>, vector<8x4xf32>
    tpu.vector_store %arg10[%c0_25, %c0_26], %40 {strides = array<i32>} : memref<8x4xf32, #tpu.memory_space<vmem>>, vector<8x4xf32>,
    return
  }
  func.func @transform_0(%arg0: i32) -> (i32, i32) {
    %c0_i32 = arith.constant 0 : i32
    %c0_i32_0 = arith.constant 0 : i32
    return %arg0, %c0_i32 : i32, i32
  }
  func.func @transform_1(%arg0: i32) -> (i32, i32) {
    %c0_i32 = arith.constant 0 : i32
    %c0_i32_0 = arith.constant 0 : i32
    %c0_i32_1 = arith.constant 0 : i32
    return %c0_i32, %c0_i32_0 : i32, i32
  }
  func.func @transform_2(%arg0: i32) -> (i32, i32) {
    %c0_i32 = arith.constant 0 : i32
    %c0_i32_0 = arith.constant 0 : i32
    %c0_i32_1 = arith.constant 0 : i32
    return %c0_i32, %c0_i32_0 : i32, i32
  }
  func.func @transform_3(%arg0: i32) -> (i32, i32) {
    %c0_i32 = arith.constant 0 : i32
    %c0_i32_0 = arith.constant 0 : i32
    %c0_i32_1 = arith.constant 0 : i32
    return %c0_i32, %c0_i32_0 : i32, i32
  }
  func.func @transform_4(%arg0: i32) -> (i32, i32) {
    %c0_i32 = arith.constant 0 : i32
    %c0_i32_0 = arith.constant 0 : i32
    %c0_i32_1 = arith.constant 0 : i32
    return %c0_i32, %c0_i32_0 : i32, i32
  }
  func.func @transform_5(%arg0: i32) -> (i32, i32) {
    %c0_i32 = arith.constant 0 : i32
    %c0_i32_0 = arith.constant 0 : i32
    %c0_i32_1 = arith.constant 0 : i32
    return %c0_i32, %c0_i32_0 : i32, i32
  }
  func.func @transform_6(%arg0: i32) -> (i32, i32) {
    %c0_i32 = arith.constant 0 : i32
    %c0_i32_0 = arith.constant 0 : i32
    %c0_i32_1 = arith.constant 0 : i32
    return %c0_i32, %c0_i32_0 : i32, i32
  }
  func.func @transform_7(%arg0: i32) -> (i32, i32) {
    %c0_i32 = arith.constant 0 : i32
    %c0_i32_0 = arith.constant 0 : i32
    %c0_i32_1 = arith.constant 0 : i32
    return %c0_i32, %c0_i32_0 : i32, i32
  }
  func.func @transform_8(%arg0: i32) -> (i32, i32) {
    %c0_i32 = arith.constant 0 : i32
    %c0_i32_0 = arith.constant 0 : i32
    %c0_i32_1 = arith.constant 0 : i32
    return %c0_i32, %c0_i32_0 : i32, i32
  }
  func.func @transform_9(%arg0: i32) -> (i32, i32) {
    %c0_i32 = arith.constant 0 : i32
    %c0_i32_0 = arith.constant 0 : i32
    return %arg0, %c0_i32 : i32, i32
  }
}

</mosaic_0001>

<llo_original>
// kernel: tpu_custom_call.1
$region0: #{tpu_custom_call.1}
  #allocation0 [shape = 'u32[]', space=smem, size = 0x4, offset = 0x4, fixed_abs, tag = 'smem constant byte address 0x4 - core index']
  #allocation1 [shape = 'u32[144,128]{1,0:T(1,128)}', space=vmem, size = 0x12000, scoped, tag = 'internal scratch']
  %s0 = inlined_call_operand.hbm [shape: bf16[8,128], index: 0, kind: input, shape index: {}]
  %s1 = inlined_call_operand.hbm [shape: bf16[128,256], index: 1, kind: input, shape index: {}]
  %s2 = inlined_call_operand.vmem [shape: f32[1,256], index: 2, kind: input, shape index: {}]
  %s3 = inlined_call_operand.hbm [shape: bf16[256,256], index: 3, kind: input, shape index: {}]
  %s4 = inlined_call_operand.vmem [shape: f32[1,256], index: 4, kind: input, shape index: {}]
  %s5 = inlined_call_operand.hbm [shape: bf16[256,512], index: 5, kind: input, shape index: {}]
  %s6 = inlined_call_operand.vmem [shape: f32[1,512], index: 6, kind: input, shape index: {}]
  %s7 = inlined_call_operand.hbm [shape: bf16[512,128], index: 7, kind: input, shape index: {}]
  %s8 = inlined_call_operand.vmem [shape: f32[1,128], index: 8, kind: input, shape index: {}]
  %s9 = inlined_call_operand.vmem [shape: f32[8,4], index: 9, kind: output, shape index: {}]
  %s10 = sld [smem:[#allocation0]]
  $region66: #{tpu_custom_call.1} parent=0
    _
  %s12 = ssub.s32 1, %s10
  %s13 = scalar_select 0, %s12, %s10
  $region1: #{tpu_custom_call.1} parent=0
    #allocation2 [shape = 'u8[2048]{0}', space=vmem, size = 0x800, scoped, tag = 'input window, operand 0, single buffered']
    #allocation3 [shape = 's32[1]{0}', space=sflag, size = 0x4, scoped, tag = 'scoped memory for tpu_custom_call.1']
    #allocation4 [shape = 'u8[65536]{0}', space=vmem, size = 0x10000, scoped, tag = 'input window, operand 1, single buffered']
    #allocation5 [shape = 's32[1]{0}', space=sflag, size = 0x4, scoped, tag = 'scoped memory for tpu_custom_call.1']
    #allocation6 [shape = 'u8[131072]{0}', space=vmem, size = 0x20000, scoped, tag = 'input window, operand 3, single buffered']
    #allocation7 [shape = 'u8[262144]{0}', space=vmem, size = 0x40000, scoped, tag = 'input window, operand 5, single buffered']
    #allocation8 [shape = 's32[1]{0}', space=sflag, size = 0x4, scoped, tag = 'scoped memory for tpu_custom_call.1']
    #allocation9 [shape = 'u8[131072]{0}', space=vmem, size = 0x20000, scoped, tag = 'input window, operand 7, single buffered']
    %14 = vsyncpa [#allocation3], 0
    %15 = vsyncpa [#allocation5], 0
    %16 = vsyncpa [#allocation8], 0
    // Predicated region
    $region2: #{tpu_custom_call.1} parent=1 // pred_check
      _
    $region3: #{tpu_custom_call.1} parent=1 // pred_check_branch
      %18 = sbr.rel (0) target = $region5
    $region4: #{tpu_custom_call.1} parent=1 // pred_region
      %s20 = ssub.s32 64, 64
      %21 = vsyncadd [#allocation3], %s20
      %s23 = sshll.u32 [#allocation2], 4
      %s24 = int_to_ptr.vmem [resolvable:$true] %s23
      %26 = dma.hbm_to_vmem [thread:$0]  %s0, 64, %s24, [#allocation3]
    $region5: #{tpu_custom_call.1} parent=1 // pred_fallthru
      _
    // Predicated region
    $region6: #{tpu_custom_call.1} parent=1 // pred_check
      _
    $region7: #{tpu_custom_call.1} parent=1 // pred_check_branch
      %28 = sbr.rel (0) target = $region9
    $region8: #{tpu_custom_call.1} parent=1 // pred_region
      %s30 = ssub.s32 2048, 2048
      %31 = vsyncadd [#allocation5], %s30
      %s32 = sshll.u32 [#allocation4], 4
      %s33 = int_to_ptr.vmem [resolvable:$true] %s32
      %38 = dma.hbm_to_vmem [thread:$0]  %s1, 2048, %s33, [#allocation5], 128, 128, 8
    $region9: #{tpu_custom_call.1} parent=1 // pred_fallthru
      _
    // Predicated region
    $region10: #{tpu_custom_call.1} parent=1 // pred_check
      _
    $region11: #{tpu_custom_call.1} parent=1 // pred_check_branch
      %40 = sbr.rel (0) target = $region13
    $region12: #{tpu_custom_call.1} parent=1 // pred_region
      _
    $region13: #{tpu_custom_call.1} parent=1 // pred_fallthru
      _
    // Predicated region
    $region14: #{tpu_custom_call.1} parent=1 // pred_check
      _
    $region15: #{tpu_custom_call.1} parent=1 // pred_check_branch
      %42 = sbr.rel (0) target = $region17
    $region16: #{tpu_custom_call.1} parent=1 // pred_region
      %s44 = ssub.s32 4096, 4096
      %45 = vsyncadd [#allocation5], %s44
      %s46 = sshll.u32 [#allocation6], 4
      %s47 = int_to_ptr.vmem [resolvable:$true] %s46
      %52 = dma.hbm_to_vmem [thread:$0]  %s3, 4096, %s47, [#allocation5], 128, 128, 8
    $region17: #{tpu_custom_call.1} parent=1 // pred_fallthru
      _
    // Predicated region
    $region18: #{tpu_custom_call.1} parent=1 // pred_check
      _
    $region19: #{tpu_custom_call.1} parent=1 // pred_check_branch
      %54 = sbr.rel (0) target = $region21
    $region20: #{tpu_custom_call.1} parent=1 // pred_region
      _
    $region21: #{tpu_custom_call.1} parent=1 // pred_fallthru
      _
    // Predicated region
    $region22: #{tpu_custom_call.1} parent=1 // pred_check
      _
    $region23: #{tpu_custom_call.1} parent=1 // pred_check_branch
      %56 = sbr.rel (0) target = $region25
    $region24: #{tpu_custom_call.1} parent=1 // pred_region
      %s58 = ssub.s32 8192, 8192
      %59 = vsyncadd [#allocation8], %s58
      %s60 = sshll.u32 [#allocation7], 4
      %s61 = int_to_ptr.vmem [resolvable:$true] %s60
      %66 = dma.hbm_to_vmem [thread:$0]  %s5, 8192, %s61, [#allocation8], 256, 256, 16
    $region25: #{tpu_custom_call.1} parent=1 // pred_fallthru
      _
    // Predicated region
    $region26: #{tpu_custom_call.1} parent=1 // pred_check
      _
    $region27: #{tpu_custom_call.1} parent=1 // pred_check_branch
      %68 = sbr.rel (0) target = $region29
    $region28: #{tpu_custom_call.1} parent=1 // pred_region
      _
    $region29: #{tpu_custom_call.1} parent=1 // pred_fallthru
      _
    // Predicated region
    $region30: #{tpu_custom_call.1} parent=1 // pred_check
      _
    $region31: #{tpu_custom_call.1} parent=1 // pred_check_branch
      %70 = sbr.rel (0) target = $region33
    $region32: #{tpu_custom_call.1} parent=1 // pred_region
      %s72 = ssub.s32 4096, 4096
      %73 = vsyncadd [#allocation8], %s72
      %s74 = sshll.u32 [#allocation9], 4
      %s75 = int_to_ptr.vmem [resolvable:$true] %s74
      %80 = dma.hbm_to_vmem [thread:$0]  %s7, 4096, %s75, [#allocation8], 64, 64, 4
    $region33: #{tpu_custom_call.1} parent=1 // pred_fallthru
      _
    // Predicated region
    $region34: #{tpu_custom_call.1} parent=1 // pred_check
      _
    $region35: #{tpu_custom_call.1} parent=1 // pred_check_branch
      %82 = sbr.rel (0) target = $region37
    $region36: #{tpu_custom_call.1} parent=1 // pred_region
      _
    $region37: #{tpu_custom_call.1} parent=1 // pred_fallthru
      _
    // Predicated region
    $region38: #{tpu_custom_call.1} parent=1 // pred_check
      _
    $region39: #{tpu_custom_call.1} parent=1 // pred_check_branch
      %84 = sbr.rel (0) target = $region41
    $region40: #{tpu_custom_call.1} parent=1 // pred_region
      %85 = dma.done [#allocation3], 64
    $region41: #{tpu_custom_call.1} parent=1 // pred_fallthru
      _
    // Predicated region
    $region42: #{tpu_custom_call.1} parent=1 // pred_check
      _
    $region43: #{tpu_custom_call.1} parent=1 // pred_check_branch
      %87 = sbr.rel (0) target = $region45
    $region44: #{tpu_custom_call.1} parent=1 // pred_region
      %88 = dma.done [#allocation5], 2048
    $region45: #{tpu_custom_call.1} parent=1 // pred_fallthru
      _
    // Predicated region
    $region46: #{tpu_custom_call.1} parent=1 // pred_check
      _
    $region47: #{tpu_custom_call.1} parent=1 // pred_check_branch
      %90 = sbr.rel (0) target = $region49
    $region48: #{tpu_custom_call.1} parent=1 // pred_region
      %91 = dma.done [#allocation5], 4096
    $region49: #{tpu_custom_call.1} parent=1 // pred_fallthru
      _
    // Predicated region
    $region50: #{tpu_custom_call.1} parent=1 // pred_check
      _
    $region51: #{tpu_custom_call.1} parent=1 // pred_check_branch
      %93 = sbr.rel (0) target = $region53
    $region52: #{tpu_custom_call.1} parent=1 // pred_region
      %94 = dma.done [#allocation8], 8192
    $region53: #{tpu_custom_call.1} parent=1 // pred_fallthru
      _
    // Predicated region
    $region54: #{tpu_custom_call.1} parent=1 // pred_check
      _
    $region55: #{tpu_custom_call.1} parent=1 // pred_check_branch
      %96 = sbr.rel (0) target = $region57
    $region56: #{tpu_custom_call.1} parent=1 // pred_region
      %97 = dma.done [#allocation8], 4096
    $region57: #{tpu_custom_call.1} parent=1 // pred_fallthru
      _
    %v99 = vld [vmem:[#allocation2] sm:$0xf]
    %v100 = vld [vmem:[#allocation4] sm:$0xff]
    %v101 = vld [vmem:[#allocation4 + $0x8] sm:$0xff]
    %v102 = vld [vmem:[#allocation4 + $0x10] sm:$0xff]
    %v103 = vld [vmem:[#allocation4 + $0x18] sm:$0xff]
    %v104 = vld [vmem:[#allocation4 + $0x20] sm:$0xff]
    %v105 = vld [vmem:[#allocation4 + $0x28] sm:$0xff]
    %v106 = vld [vmem:[#allocation4 + $0x30] sm:$0xff]
    %v107 = vld [vmem:[#allocation4 + $0x38] sm:$0xff]
    %v108 = vld [vmem:[#allocation4 + $0x40] sm:$0xff]
    %v109 = vld [vmem:[#allocation4 + $0x48] sm:$0xff]
    %v110 = vld [vmem:[#allocation4 + $0x50] sm:$0xff]
    %v111 = vld [vmem:[#allocation4 + $0x58] sm:$0xff]
    %v112 = vld [vmem:[#allocation4 + $0x60] sm:$0xff]
    %v113 = vld [vmem:[#allocation4 + $0x68] sm:$0xff]
    %v114 = vld [vmem:[#allocation4 + $0x70] sm:$0xff]
    %v115 = vld [vmem:[#allocation4 + $0x78] sm:$0xff]
    %v116 = vld [vmem:[%s2] sm:$0x3]
    %v118 = vlaneseq
    %v119 = vshrl.u32 %v118, 7
    %v120 = vsub.s32 0, %v119
    %v121 = vrot.slane %v116, %v120
    %v122 = vlaneseq
    %v123 = vshrl.u32 %v122, 7
    %v124 = vsub.s32 1, %v123
    %v125 = vrot.slane %v116, %v124
    %v144 = vunpack.c.l.b16 %v100
    %v145 = vunpack.c.h.b16 %v100
    %v146 = vunpack.c.l.b16 %v101
    %v147 = vunpack.c.h.b16 %v101
    %v148 = vunpack.c.l.b16 %v102
    %v149 = vunpack.c.h.b16 %v102
    %v150 = vunpack.c.l.b16 %v103
    %v151 = vunpack.c.h.b16 %v103
    %v152 = vunpack.c.l.b16 %v104
    %v153 = vunpack.c.h.b16 %v104
    %v154 = vunpack.c.l.b16 %v105
    %v155 = vunpack.c.h.b16 %v105
    %v156 = vunpack.c.l.b16 %v106
    %v157 = vunpack.c.h.b16 %v106
    %v158 = vunpack.c.l.b16 %v107
    %v159 = vunpack.c.h.b16 %v107
    %v160 = vunpack.c.l.b16 %v108
    %v161 = vunpack.c.h.b16 %v108
    %v162 = vunpack.c.l.b16 %v109
    %v163 = vunpack.c.h.b16 %v109
    %v164 = vunpack.c.l.b16 %v110
    %v165 = vunpack.c.h.b16 %v110
    %v166 = vunpack.c.l.b16 %v111
    %v167 = vunpack.c.h.b16 %v111
    %v168 = vunpack.c.l.b16 %v112
    %v169 = vunpack.c.h.b16 %v112
    %v170 = vunpack.c.l.b16 %v113
    %v171 = vunpack.c.h.b16 %v113
    %v172 = vunpack.c.l.b16 %v114
    %v173 = vunpack.c.h.b16 %v114
    %v174 = vunpack.c.l.b16 %v115
    %v175 = vunpack.c.h.b16 %v115
    %v176 = vpack.c.b16 %v146, %v144
    %v177 = vpack.c.b16 %v147, %v145
    %v178 = vpack.c.b16 %v150, %v148
    %v179 = vpack.c.b16 %v151, %v149
    %v180 = vpack.c.b16 %v154, %v152
    %v181 = vpack.c.b16 %v155, %v153
    %v182 = vpack.c.b16 %v158, %v156
    %v183 = vpack.c.b16 %v159, %v157
    %v184 = vpack.c.b16 %v162, %v160
    %v185 = vpack.c.b16 %v163, %v161
    %v186 = vpack.c.b16 %v166, %v164
    %v187 = vpack.c.b16 %v167, %v165
    %v188 = vpack.c.b16 %v170, %v168
    %v189 = vpack.c.b16 %v171, %v169
    %v190 = vpack.c.b16 %v174, %v172
    %v191 = vpack.c.b16 %v175, %v173
    %208 = vmatprep.subr.bf16.mxu0 %v177
    %209 = vmatpush1.bf16.msra.mxu0 %v176
    %210 = vmatprep.subr.bf16.mxu0 %v179
    %211 = vmatpush1.bf16.msra.mxu0 %v178
    %212 = vmatprep.subr.bf16.mxu0 %v181
    %213 = vmatpush1.bf16.msra.mxu0 %v180
    %214 = vmatprep.subr.bf16.mxu0 %v183
    %215 = vmatpush1.bf16.msra.mxu0 %v182
    %216 = vmatprep.subr.bf16.mxu0 %v185
    %217 = vmatpush1.bf16.msra.mxu0 %v184
    %218 = vmatprep.subr.bf16.mxu0 %v187
    %219 = vmatpush1.bf16.msra.mxu0 %v186
    %220 = vmatprep.subr.bf16.mxu0 %v189
    %221 = vmatpush1.bf16.msra.mxu0 %v188
    %222 = vmatprep.subr.bf16.mxu0 %v191
    %223 = vmatpush1.bf16.msra.mxu0 %v190
    %224 = vmatprep.subr.bf16.mxu0 0
    %225 = vmatpush1.bf16.msra.mxu0 0
    %226 = vmatprep.subr.bf16.mxu0 0
    %227 = vmatpush1.bf16.msra.mxu0 0
    %228 = vmatprep.subr.bf16.mxu0 0
    %229 = vmatpush1.bf16.msra.mxu0 0
    %230 = vmatprep.subr.bf16.mxu0 0
    %231 = vmatpush1.bf16.msra.mxu0 0
    %232 = vmatprep.subr.bf16.mxu0 0
    %233 = vmatpush1.bf16.msra.mxu0 0
    %234 = vmatprep.subr.bf16.mxu0 0
    %235 = vmatpush1.bf16.msra.mxu0 0
    %236 = vmatprep.subr.bf16.mxu0 0
    %237 = vmatpush1.bf16.msra.mxu0 0
    %238 = vmatprep.subr.bf16.mxu0 0
    %239 = vmatpush1.bf16.msra.mxu0 0
    %240 = vmatprep.mubr.bf16.mxu0 0
    %241 = vmatmul.mubr.bf16.gmra.mrb[0].mxu0 %v99
    %v242 = vpop.f32.mrb[0].mxu0
    %v243 = vadd.f32 %v121, %v242
    %v244 = vpop.f32.mrb[0].mxu0
    %v245 = vadd.f32 %v125, %v244
    %v246 = vpop.f32.mrb[0].mxu0
    %v247 = vpop.f32.mrb[0].mxu0
    %248 = vdwg.mxu0
    %v249 = vmax.f32 %v243, 0.0
    %v250 = vmax.f32 %v245, 0.0
    %v251 = vpack.c.bf16 %v249, %v249
    %v252 = vpack.c.bf16 %v250, %v250
    %v253 = vld [vmem:[#allocation6] sm:$0xff]
    %v254 = vld [vmem:[#allocation6 + $0x8] sm:$0xff]
    %v255 = vld [vmem:[#allocation6 + $0x10] sm:$0xff]
    %v256 = vld [vmem:[#allocation6 + $0x18] sm:$0xff]
    %v257 = vld [vmem:[#allocation6 + $0x20] sm:$0xff]
    %v258 = vld [vmem:[#allocation6 + $0x28] sm:$0xff]
    %v259 = vld [vmem:[#allocation6 + $0x30] sm:$0xff]
    %v260 = vld [vmem:[#allocation6 + $0x38] sm:$0xff]
    %v261 = vld [vmem:[#allocation6 + $0x40] sm:$0xff]
    %v262 = vld [vmem:[#allocation6 + $0x48] sm:$0xff]
    %v263 = vld [vmem:[#allocation6 + $0x50] sm:$0xff]
    %v264 = vld [vmem:[#allocation6 + $0x58] sm:$0xff]
    %v265 = vld [vmem:[#allocation6 + $0x60] sm:$0xff]
    %v266 = vld [vmem:[#allocation6 + $0x68] sm:$0xff]
    %v267 = vld [vmem:[#allocation6 + $0x70] sm:$0xff]
    %v268 = vld [vmem:[#allocation6 + $0x78] sm:$0xff]
    %v269 = vld [vmem:[#allocation6 + $0x80] sm:$0xff]
    %v270 = vld [vmem:[#allocation6 + $0x88] sm:$0xff]
    %v271 = vld [vmem:[#allocation6 + $0x90] sm:$0xff]
    %v272 = vld [vmem:[#allocation6 + $0x98] sm:$0xff]
    %v273 = vld [vmem:[#allocation6 + $0xa0] sm:$0xff]
    %v274 = vld [vmem:[#allocation6 + $0xa8] sm:$0xff]
    %v275 = vld [vmem:[#allocation6 + $0xb0] sm:$0xff]
    %v276 = vld [vmem:[#allocation6 + $0xb8] sm:$0xff]
    %v277 = vld [vmem:[#allocation6 + $0xc0] sm:$0xff]
    %v278 = vld [vmem:[#allocation6 + $0xc8] sm:$0xff]
    %v279 = vld [vmem:[#allocation6 + $0xd0] sm:$0xff]
    %v280 = vld [vmem:[#allocation6 + $0xd8] sm:$0xff]
    %v281 = vld [vmem:[#allocation6 + $0xe0] sm:$0xff]
    %v282 = vld [vmem:[#allocation6 + $0xe8] sm:$0xff]
    %v283 = vld [vmem:[#allocation6 + $0xf0] sm:$0xff]
    %v284 = vld [vmem:[#allocation6 + $0xf8] sm:$0xff]
    %v285 = vld [vmem:[%s4] sm:$0x3]
    %v287 = vlaneseq
    %v288 = vshrl.u32 %v287, 7
    %v289 = vsub.s32 0, %v288
    %v290 = vrot.slane %v285, %v289
    %v291 = vlaneseq
    %v292 = vshrl.u32 %v291, 7
    %v293 = vsub.s32 1, %v292
    %v294 = vrot.slane %v285, %v293
    %v329 = vunpack.c.l.b16 %v253
    %v330 = vunpack.c.h.b16 %v253
    %v331 = vunpack.c.l.b16 %v254
    %v332 = vunpack.c.h.b16 %v254
    %v333 = vunpack.c.l.b16 %v255
    %v334 = vunpack.c.h.b16 %v255
    %v335 = vunpack.c.l.b16 %v256
    %v336 = vunpack.c.h.b16 %v256
    %v337 = vunpack.c.l.b16 %v257
    %v338 = vunpack.c.h.b16 %v257
    %v339 = vunpack.c.l.b16 %v258
    %v340 = vunpack.c.h.b16 %v258
    %v341 = vunpack.c.l.b16 %v259
    %v342 = vunpack.c.h.b16 %v259
    %v343 = vunpack.c.l.b16 %v260
    %v344 = vunpack.c.h.b16 %v260
    %v345 = vunpack.c.l.b16 %v261
    %v346 = vunpack.c.h.b16 %v261
    %v347 = vunpack.c.l.b16 %v262
    %v348 = vunpack.c.h.b16 %v262
    %v349 = vunpack.c.l.b16 %v263
    %v350 = vunpack.c.h.b16 %v263
    %v351 = vunpack.c.l.b16 %v264
    %v352 = vunpack.c.h.b16 %v264
    %v353 = vunpack.c.l.b16 %v265
    %v354 = vunpack.c.h.b16 %v265
    %v355 = vunpack.c.l.b16 %v266
    %v356 = vunpack.c.h.b16 %v266
    %v357 = vunpack.c.l.b16 %v267
    %v358 = vunpack.c.h.b16 %v267
    %v359 = vunpack.c.l.b16 %v268
    %v360 = vunpack.c.h.b16 %v268
    %v361 = vunpack.c.l.b16 %v269
    %v362 = vunpack.c.h.b16 %v269
    %v363 = vunpack.c.l.b16 %v270
    %v364 = vunpack.c.h.b16 %v270
    %v365 = vunpack.c.l.b16 %v271
    %v366 = vunpack.c.h.b16 %v271
    %v367 = vunpack.c.l.b16 %v272
    %v368 = vunpack.c.h.b16 %v272
    %v369 = vunpack.c.l.b16 %v273
    %v370 = vunpack.c.h.b16 %v273
    %v371 = vunpack.c.l.b16 %v274
    %v372 = vunpack.c.h.b16 %v274
    %v373 = vunpack.c.l.b16 %v275
    %v374 = vunpack.c.h.b16 %v275
    %v375 = vunpack.c.l.b16 %v276
    %v376 = vunpack.c.h.b16 %v276
    %v377 = vunpack.c.l.b16 %v277
    %v378 = vunpack.c.h.b16 %v277
    %v379 = vunpack.c.l.b16 %v278
    %v380 = vunpack.c.h.b16 %v278
    %v381 = vunpack.c.l.b16 %v279
    %v382 = vunpack.c.h.b16 %v279
    %v383 = vunpack.c.l.b16 %v280
    %v384 = vunpack.c.h.b16 %v280
    %v385 = vunpack.c.l.b16 %v281
    %v386 = vunpack.c.h.b16 %v281
    %v387 = vunpack.c.l.b16 %v282
    %v388 = vunpack.c.h.b16 %v282
    %v389 = vunpack.c.l.b16 %v283
    %v390 = vunpack.c.h.b16 %v283
    %v391 = vunpack.c.l.b16 %v284
    %v392 = vunpack.c.h.b16 %v284
    %v393 = vpack.c.b16 %v331, %v329
    %v394 = vpack.c.b16 %v332, %v330
    %v395 = vpack.c.b16 %v335, %v333
    %v396 = vpack.c.b16 %v336, %v334
    %v397 = vpack.c.b16 %v339, %v337
    %v398 = vpack.c.b16 %v340, %v338
    %v399 = vpack.c.b16 %v343, %v341
    %v400 = vpack.c.b16 %v344, %v342
    %v401 = vpack.c.b16 %v347, %v345
    %v402 = vpack.c.b16 %v348, %v346
    %v403 = vpack.c.b16 %v351, %v349
    %v404 = vpack.c.b16 %v352, %v350
    %v405 = vpack.c.b16 %v355, %v353
    %v406 = vpack.c.b16 %v356, %v354
    %v407 = vpack.c.b16 %v359, %v357
    %v408 = vpack.c.b16 %v360, %v358
    %v409 = vpack.c.b16 %v363, %v361
    %v410 = vpack.c.b16 %v364, %v362
    %v411 = vpack.c.b16 %v367, %v365
    %v412 = vpack.c.b16 %v368, %v366
    %v413 = vpack.c.b16 %v371, %v369
    %v414 = vpack.c.b16 %v372, %v370
    %v415 = vpack.c.b16 %v375, %v373
    %v416 = vpack.c.b16 %v376, %v374
    %v417 = vpack.c.b16 %v379, %v377
    %v418 = vpack.c.b16 %v380, %v378
    %v419 = vpack.c.b16 %v383, %v381
    %v420 = vpack.c.b16 %v384, %v382
    %v421 = vpack.c.b16 %v387, %v385
    %v422 = vpack.c.b16 %v388, %v386
    %v423 = vpack.c.b16 %v391, %v389
    %v424 = vpack.c.b16 %v392, %v390
    %457 = vmatprep.subr.bf16.mxu0 %v394
    %458 = vmatpush1.bf16.msra.mxu0 %v393
    %459 = vmatprep.subr.bf16.mxu0 %v396
    %460 = vmatpush1.bf16.msra.mxu0 %v395
    %461 = vmatprep.subr.bf16.mxu0 %v398
    %462 = vmatpush1.bf16.msra.mxu0 %v397
    %463 = vmatprep.subr.bf16.mxu0 %v400
    %464 = vmatpush1.bf16.msra.mxu0 %v399
    %465 = vmatprep.subr.bf16.mxu0 %v402
    %466 = vmatpush1.bf16.msra.mxu0 %v401
    %467 = vmatprep.subr.bf16.mxu0 %v404
    %468 = vmatpush1.bf16.msra.mxu0 %v403
    %469 = vmatprep.subr.bf16.mxu0 %v406
    %470 = vmatpush1.bf16.msra.mxu0 %v405
    %471 = vmatprep.subr.bf16.mxu0 %v408
    %472 = vmatpush1.bf16.msra.mxu0 %v407
    %473 = vmatprep.subr.bf16.mxu0 %v410
    %474 = vmatpush1.bf16.msra.mxu0 %v409
    %475 = vmatprep.subr.bf16.mxu0 %v412
    %476 = vmatpush1.bf16.msra.mxu0 %v411
    %477 = vmatprep.subr.bf16.mxu0 %v414
    %478 = vmatpush1.bf16.msra.mxu0 %v413
    %479 = vmatprep.subr.bf16.mxu0 %v416
    %480 = vmatpush1.bf16.msra.mxu0 %v415
    %481 = vmatprep.subr.bf16.mxu0 %v418
    %482 = vmatpush1.bf16.msra.mxu0 %v417
    %483 = vmatprep.subr.bf16.mxu0 %v420
    %484 = vmatpush1.bf16.msra.mxu0 %v419
    %485 = vmatprep.subr.bf16.mxu0 %v422
    %486 = vmatpush1.bf16.msra.mxu0 %v421
    %487 = vmatprep.subr.bf16.mxu0 %v424
    %488 = vmatpush1.bf16.msra.mxu0 %v423
    %489 = vmatprep.mubr.bf16.mxu0 %v252
    %490 = vmatmul.mubr.bf16.gmra.mrb[0].mxu0 %v251
    %v491 = vpop.f32.mrb[0].mxu0
    %v492 = vadd.f32 %v290, %v491
    %v493 = vpop.f32.mrb[0].mxu0
    %v494 = vadd.f32 %v294, %v493
    %v495 = vpop.f32.mrb[0].mxu0
    %v496 = vpop.f32.mrb[0].mxu0
    %497 = vdwg.mxu0
    %v498 = vmax.f32 %v492, 0.0
    %v499 = vmax.f32 %v494, 0.0
    %v500 = vpack.c.bf16 %v498, %v498
    %v501 = vpack.c.bf16 %v499, %v499
    %v502 = vld [vmem:[#allocation7] sm:$0xff]
    %v503 = vld [vmem:[#allocation7 + $0x8] sm:$0xff]
    %v504 = vld [vmem:[#allocation7 + $0x10] sm:$0xff]
    %v505 = vld [vmem:[#allocation7 + $0x18] sm:$0xff]
    %v506 = vld [vmem:[#allocation7 + $0x20] sm:$0xff]
    %v507 = vld [vmem:[#allocation7 + $0x28] sm:$0xff]
    %v508 = vld [vmem:[#allocation7 + $0x30] sm:$0xff]
    %v509 = vld [vmem:[#allocation7 + $0x38] sm:$0xff]
    %v510 = vld [vmem:[#allocation7 + $0x40] sm:$0xff]
    %v511 = vld [vmem:[#allocation7 + $0x48] sm:$0xff]
    %v512 = vld [vmem:[#allocation7 + $0x50] sm:$0xff]
    %v513 = vld [vmem:[#allocation7 + $0x58] sm:$0xff]
    %v514 = vld [vmem:[#allocation7 + $0x60] sm:$0xff]
    %v515 = vld [vmem:[#allocation7 + $0x68] sm:$0xff]
    %v516 = vld [vmem:[#allocation7 + $0x70] sm:$0xff]
    %v517 = vld [vmem:[#allocation7 + $0x78] sm:$0xff]
    %v518 = vld [vmem:[#allocation7 + $0x80] sm:$0xff]
    %v519 = vld [vmem:[#allocation7 + $0x88] sm:$0xff]
    %v520 = vld [vmem:[#allocation7 + $0x90] sm:$0xff]
    %v521 = vld [vmem:[#allocation7 + $0x98] sm:$0xff]
    %v522 = vld [vmem:[#allocation7 + $0xa0] sm:$0xff]
    %v523 = vld [vmem:[#allocation7 + $0xa8] sm:$0xff]
    %v524 = vld [vmem:[#allocation7 + $0xb0] sm:$0xff]
    %v525 = vld [vmem:[#allocation7 + $0xb8] sm:$0xff]
    %v526 = vld [vmem:[#allocation7 + $0xc0] sm:$0xff]
    %v527 = vld [vmem:[#allocation7 + $0xc8] sm:$0xff]
    %v528 = vld [vmem:[#allocation7 + $0xd0] sm:$0xff]
    %v529 = vld [vmem:[#allocation7 + $0xd8] sm:$0xff]
    %v530 = vld [vmem:[#allocation7 + $0xe0] sm:$0xff]
    %v531 = vld [vmem:[#allocation7 + $0xe8] sm:$0xff]
    %v532 = vld [vmem:[#allocation7 + $0xf0] sm:$0xff]
    %v533 = vld [vmem:[#allocation7 + $0xf8] sm:$0xff]
    %v534 = vld [vmem:[#allocation7 + $0x100] sm:$0xff]
    %v535 = vld [vmem:[#allocation7 + $0x108] sm:$0xff]
    %v536 = vld [vmem:[#allocation7 + $0x110] sm:$0xff]
    %v537 = vld [vmem:[#allocation7 + $0x118] sm:$0xff]
    %v538 = vld [vmem:[#allocation7 + $0x120] sm:$0xff]
    %v539 = vld [vmem:[#allocation7 + $0x128] sm:$0xff]
    %v540 = vld [vmem:[#allocation7 + $0x130] sm:$0xff]
    %v541 = vld [vmem:[#allocation7 + $0x138] sm:$0xff]
    %v542 = vld [vmem:[#allocation7 + $0x140] sm:$0xff]
    %v543 = vld [vmem:[#allocation7 + $0x148] sm:$0xff]
    %v544 = vld [vmem:[#allocation7 + $0x150] sm:$0xff]
    %v545 = vld [vmem:[#allocation7 + $0x158] sm:$0xff]
    %v546 = vld [vmem:[#allocation7 + $0x160] sm:$0xff]
    %v547 = vld [vmem:[#allocation7 + $0x168] sm:$0xff]
    %v548 = vld [vmem:[#allocation7 + $0x170] sm:$0xff]
    %v549 = vld [vmem:[#allocation7 + $0x178] sm:$0xff]
    %v550 = vld [vmem:[#allocation7 + $0x180] sm:$0xff]
    %v551 = vld [vmem:[#allocation7 + $0x188] sm:$0xff]
    %v552 = vld [vmem:[#allocation7 + $0x190] sm:$0xff]
    %v553 = vld [vmem:[#allocation7 + $0x198] sm:$0xff]
    %v554 = vld [vmem:[#allocation7 + $0x1a0] sm:$0xff]
    %v555 = vld [vmem:[#allocation7 + $0x1a8] sm:$0xff]
    %v556 = vld [vmem:[#allocation7 + $0x1b0] sm:$0xff]
    %v557 = vld [vmem:[#allocation7 + $0x1b8] sm:$0xff]
    %v558 = vld [vmem:[#allocation7 + $0x1c0] sm:$0xff]
    %v559 = vld [vmem:[#allocation7 + $0x1c8] sm:$0xff]
    %v560 = vld [vmem:[#allocation7 + $0x1d0] sm:$0xff]
    %v561 = vld [vmem:[#allocation7 + $0x1d8] sm:$0xff]
    %v562 = vld [vmem:[#allocation7 + $0x1e0] sm:$0xff]
    %v563 = vld [vmem:[#allocation7 + $0x1e8] sm:$0xff]
    %v564 = vld [vmem:[#allocation7 + $0x1f0] sm:$0xff]
    %v565 = vld [vmem:[#allocation7 + $0x1f8] sm:$0xff]
    %v566 = vld [vmem:[%s6] sm:$0xf]
    %v568 = vlaneseq
    %v569 = vshrl.u32 %v568, 7
    %v570 = vsub.s32 0, %v569
    %v571 = vrot.slane %v566, %v570
    %v572 = vlaneseq
    %v573 = vshrl.u32 %v572, 7
    %v574 = vsub.s32 1, %v573
    %v575 = vrot.slane %v566, %v574
    %v576 = vlaneseq
    %v577 = vshrl.u32 %v576, 7
    %v578 = vsub.s32 2, %v577
    %v579 = vrot.slane %v566, %v578
    %v580 = vlaneseq
    %v581 = vshrl.u32 %v580, 7
    %v582 = vsub.s32 3, %v581
    %v583 = vrot.slane %v566, %v582
    %v652 = vunpack.c.l.b16 %v502
    %v653 = vunpack.c.h.b16 %v502
    %v654 = vunpack.c.l.b16 %v503
    %v655 = vunpack.c.h.b16 %v503
    %v656 = vunpack.c.l.b16 %v504
    %v657 = vunpack.c.h.b16 %v504
    %v658 = vunpack.c.l.b16 %v505
    %v659 = vunpack.c.h.b16 %v505
    %v660 = vunpack.c.l.b16 %v506
    %v661 = vunpack.c.h.b16 %v506
    %v662 = vunpack.c.l.b16 %v507
    %v663 = vunpack.c.h.b16 %v507
    %v664 = vunpack.c.l.b16 %v508
    %v665 = vunpack.c.h.b16 %v508
    %v666 = vunpack.c.l.b16 %v509
    %v667 = vunpack.c.h.b16 %v509
    %v668 = vunpack.c.l.b16 %v510
    %v669 = vunpack.c.h.b16 %v510
    %v670 = vunpack.c.l.b16 %v511
    %v671 = vunpack.c.h.b16 %v511
    %v672 = vunpack.c.l.b16 %v512
    %v673 = vunpack.c.h.b16 %v512
    %v674 = vunpack.c.l.b16 %v513
    %v675 = vunpack.c.h.b16 %v513
    %v676 = vunpack.c.l.b16 %v514
    %v677 = vunpack.c.h.b16 %v514
    %v678 = vunpack.c.l.b16 %v515
    %v679 = vunpack.c.h.b16 %v515
    %v680 = vunpack.c.l.b16 %v516
    %v681 = vunpack.c.h.b16 %v516
    %v682 = vunpack.c.l.b16 %v517
    %v683 = vunpack.c.h.b16 %v517
    %v684 = vunpack.c.l.b16 %v518
    %v685 = vunpack.c.h.b16 %v518
    %v686 = vunpack.c.l.b16 %v519
    %v687 = vunpack.c.h.b16 %v519
    %v688 = vunpack.c.l.b16 %v520
    %v689 = vunpack.c.h.b16 %v520
    %v690 = vunpack.c.l.b16 %v521
    %v691 = vunpack.c.h.b16 %v521
    %v692 = vunpack.c.l.b16 %v522
    %v693 = vunpack.c.h.b16 %v522
    %v694 = vunpack.c.l.b16 %v523
    %v695 = vunpack.c.h.b16 %v523
    %v696 = vunpack.c.l.b16 %v524
    %v697 = vunpack.c.h.b16 %v524
    %v698 = vunpack.c.l.b16 %v525
    %v699 = vunpack.c.h.b16 %v525
    %v700 = vunpack.c.l.b16 %v526
    %v701 = vunpack.c.h.b16 %v526
    %v702 = vunpack.c.l.b16 %v527
    %v703 = vunpack.c.h.b16 %v527
    %v704 = vunpack.c.l.b16 %v528
    %v705 = vunpack.c.h.b16 %v528
    %v706 = vunpack.c.l.b16 %v529
    %v707 = vunpack.c.h.b16 %v529
    %v708 = vunpack.c.l.b16 %v530
    %v709 = vunpack.c.h.b16 %v530
    %v710 = vunpack.c.l.b16 %v531
    %v711 = vunpack.c.h.b16 %v531
    %v712 = vunpack.c.l.b16 %v532
    %v713 = vunpack.c.h.b16 %v532
    %v714 = vunpack.c.l.b16 %v533
    %v715 = vunpack.c.h.b16 %v533
    %v716 = vunpack.c.l.b16 %v534
    %v717 = vunpack.c.h.b16 %v534
    %v718 = vunpack.c.l.b16 %v535
    %v719 = vunpack.c.h.b16 %v535
    %v720 = vunpack.c.l.b16 %v536
    %v721 = vunpack.c.h.b16 %v536
    %v722 = vunpack.c.l.b16 %v537
    %v723 = vunpack.c.h.b16 %v537
    %v724 = vunpack.c.l.b16 %v538
    %v725 = vunpack.c.h.b16 %v538
    %v726 = vunpack.c.l.b16 %v539
    %v727 = vunpack.c.h.b16 %v539
    %v728 = vunpack.c.l.b16 %v540
    %v729 = vunpack.c.h.b16 %v540
    %v730 = vunpack.c.l.b16 %v541
    %v731 = vunpack.c.h.b16 %v541
    %v732 = vunpack.c.l.b16 %v542
    %v733 = vunpack.c.h.b16 %v542
    %v734 = vunpack.c.l.b16 %v543
    %v735 = vunpack.c.h.b16 %v543
    %v736 = vunpack.c.l.b16 %v544
    %v737 = vunpack.c.h.b16 %v544
    %v738 = vunpack.c.l.b16 %v545
    %v739 = vunpack.c.h.b16 %v545
    %v740 = vunpack.c.l.b16 %v546
    %v741 = vunpack.c.h.b16 %v546
    %v742 = vunpack.c.l.b16 %v547
    %v743 = vunpack.c.h.b16 %v547
    %v744 = vunpack.c.l.b16 %v548
    %v745 = vunpack.c.h.b16 %v548
    %v746 = vunpack.c.l.b16 %v549
    %v747 = vunpack.c.h.b16 %v549
    %v748 = vunpack.c.l.b16 %v550
    %v749 = vunpack.c.h.b16 %v550
    %v750 = vunpack.c.l.b16 %v551
    %v751 = vunpack.c.h.b16 %v551
    %v752 = vunpack.c.l.b16 %v552
    %v753 = vunpack.c.h.b16 %v552
    %v754 = vunpack.c.l.b16 %v553
    %v755 = vunpack.c.h.b16 %v553
    %v756 = vunpack.c.l.b16 %v554
    %v757 = vunpack.c.h.b16 %v554
    %v758 = vunpack.c.l.b16 %v555
    %v759 = vunpack.c.h.b16 %v555
    %v760 = vunpack.c.l.b16 %v556
    %v761 = vunpack.c.h.b16 %v556
    %v762 = vunpack.c.l.b16 %v557
    %v763 = vunpack.c.h.b16 %v557
    %v764 = vunpack.c.l.b16 %v558
    %v765 = vunpack.c.h.b16 %v558
    %v766 = vunpack.c.l.b16 %v559
    %v767 = vunpack.c.h.b16 %v559
    %v768 = vunpack.c.l.b16 %v560
    %v769 = vunpack.c.h.b16 %v560
    %v770 = vunpack.c.l.b16 %v561
    %v771 = vunpack.c.h.b16 %v561
    %v772 = vunpack.c.l.b16 %v562
    %v773 = vunpack.c.h.b16 %v562
    %v774 = vunpack.c.l.b16 %v563
    %v775 = vunpack.c.h.b16 %v563
    %v776 = vunpack.c.l.b16 %v564
    %v777 = vunpack.c.h.b16 %v564
    %v778 = vunpack.c.l.b16 %v565
    %v779 = vunpack.c.h.b16 %v565
    %v780 = vpack.c.b16 %v656, %v652
    %v781 = vpack.c.b16 %v657, %v653
    %v782 = vpack.c.b16 %v658, %v654
    %v783 = vpack.c.b16 %v659, %v655
    %v784 = vpack.c.b16 %v664, %v660
    %v785 = vpack.c.b16 %v665, %v661
    %v786 = vpack.c.b16 %v666, %v662
    %v787 = vpack.c.b16 %v667, %v663
    %v788 = vpack.c.b16 %v672, %v668
    %v789 = vpack.c.b16 %v673, %v669
    %v790 = vpack.c.b16 %v674, %v670
    %v791 = vpack.c.b16 %v675, %v671
    %v792 = vpack.c.b16 %v680, %v676
    %v793 = vpack.c.b16 %v681, %v677
    %v794 = vpack.c.b16 %v682, %v678
    %v795 = vpack.c.b16 %v683, %v679
    %v796 = vpack.c.b16 %v688, %v684
    %v797 = vpack.c.b16 %v689, %v685
    %v798 = vpack.c.b16 %v690, %v686
    %v799 = vpack.c.b16 %v691, %v687
    %v800 = vpack.c.b16 %v696, %v692
    %v801 = vpack.c.b16 %v697, %v693
    %v802 = vpack.c.b16 %v698, %v694
    %v803 = vpack.c.b16 %v699, %v695
    %v804 = vpack.c.b16 %v704, %v700
    %v805 = vpack.c.b16 %v705, %v701
    %v806 = vpack.c.b16 %v706, %v702
    %v807 = vpack.c.b16 %v707, %v703
    %v808 = vpack.c.b16 %v712, %v708
    %v809 = vpack.c.b16 %v713, %v709
    %v810 = vpack.c.b16 %v714, %v710
    %v811 = vpack.c.b16 %v715, %v711
    %v812 = vpack.c.b16 %v720, %v716
    %v813 = vpack.c.b16 %v721, %v717
    %v814 = vpack.c.b16 %v722, %v718
    %v815 = vpack.c.b16 %v723, %v719
    %v816 = vpack.c.b16 %v728, %v724
    %v817 = vpack.c.b16 %v729, %v725
    %v818 = vpack.c.b16 %v730, %v726
    %v819 = vpack.c.b16 %v731, %v727
    %v820 = vpack.c.b16 %v736, %v732
    %v821 = vpack.c.b16 %v737, %v733
    %v822 = vpack.c.b16 %v738, %v734
    %v823 = vpack.c.b16 %v739, %v735
    %v824 = vpack.c.b16 %v744, %v740
    %v825 = vpack.c.b16 %v745, %v741
    %v826 = vpack.c.b16 %v746, %v742
    %v827 = vpack.c.b16 %v747, %v743
    %v828 = vpack.c.b16 %v752, %v748
    %v829 = vpack.c.b16 %v753, %v749
    %v830 = vpack.c.b16 %v754, %v750
    %v831 = vpack.c.b16 %v755, %v751
    %v832 = vpack.c.b16 %v760, %v756
    %v833 = vpack.c.b16 %v761, %v757
    %v834 = vpack.c.b16 %v762, %v758
    %v835 = vpack.c.b16 %v763, %v759
    %v836 = vpack.c.b16 %v768, %v764
    %v837 = vpack.c.b16 %v769, %v765
    %v838 = vpack.c.b16 %v770, %v766
    %v839 = vpack.c.b16 %v771, %v767
    %v840 = vpack.c.b16 %v776, %v772
    %v841 = vpack.c.b16 %v777, %v773
    %v842 = vpack.c.b16 %v778, %v774
    %v843 = vpack.c.b16 %v779, %v775
    %908 = vmatprep.subr.bf16.mxu0 %v781
    %909 = vmatpush1.bf16.msra.mxu0 %v780
    %910 = vmatprep.subr.bf16.mxu0 %v785
    %911 = vmatpush1.bf16.msra.mxu0 %v784
    %912 = vmatprep.subr.bf16.mxu0 %v789
    %913 = vmatpush1.bf16.msra.mxu0 %v788
    %914 = vmatprep.subr.bf16.mxu0 %v793
    %915 = vmatpush1.bf16.msra.mxu0 %v792
    %916 = vmatprep.subr.bf16.mxu0 %v797
    %917 = vmatpush1.bf16.msra.mxu0 %v796
    %918 = vmatprep.subr.bf16.mxu0 %v801
    %919 = vmatpush1.bf16.msra.mxu0 %v800
    %920 = vmatprep.subr.bf16.mxu0 %v805
    %921 = vmatpush1.bf16.msra.mxu0 %v804
    %922 = vmatprep.subr.bf16.mxu0 %v809
    %923 = vmatpush1.bf16.msra.mxu0 %v808
    %924 = vmatprep.subr.bf16.mxu0 %v813
    %925 = vmatpush1.bf16.msra.mxu0 %v812
    %926 = vmatprep.subr.bf16.mxu0 %v817
    %927 = vmatpush1.bf16.msra.mxu0 %v816
    %928 = vmatprep.subr.bf16.mxu0 %v821
    %929 = vmatpush1.bf16.msra.mxu0 %v820
    %930 = vmatprep.subr.bf16.mxu0 %v825
    %931 = vmatpush1.bf16.msra.mxu0 %v824
    %932 = vmatprep.subr.bf16.mxu0 %v829
    %933 = vmatpush1.bf16.msra.mxu0 %v828
    %934 = vmatprep.subr.bf16.mxu0 %v833
    %935 = vmatpush1.bf16.msra.mxu0 %v832
    %936 = vmatprep.subr.bf16.mxu0 %v837
    %937 = vmatpush1.bf16.msra.mxu0 %v836
    %938 = vmatprep.subr.bf16.mxu0 %v841
    %939 = vmatpush1.bf16.msra.mxu0 %v840
    %940 = vmatprep.mubr.bf16.mxu0 %v501
    %941 = vmatmul.mubr.bf16.gmra.mrb[0].mxu0 %v500
    %v942 = vpop.f32.mrb[0].mxu0
    %v943 = vadd.f32 %v571, %v942
    %v944 = vpop.f32.mrb[0].mxu0
    %v945 = vadd.f32 %v575, %v944
    %v946 = vpop.f32.mrb[0].mxu0
    %v947 = vpop.f32.mrb[0].mxu0
    %948 = vdwg.mxu0
    %949 = vmatprep.subr.bf16.mxu0 %v783
    %950 = vmatpush1.bf16.msra.mxu0 %v782
    %951 = vmatprep.subr.bf16.mxu0 %v787
    %952 = vmatpush1.bf16.msra.mxu0 %v786
    %953 = vmatprep.subr.bf16.mxu0 %v791
    %954 = vmatpush1.bf16.msra.mxu0 %v790
    %955 = vmatprep.subr.bf16.mxu0 %v795
    %956 = vmatpush1.bf16.msra.mxu0 %v794
    %957 = vmatprep.subr.bf16.mxu0 %v799
    %958 = vmatpush1.bf16.msra.mxu0 %v798
    %959 = vmatprep.subr.bf16.mxu0 %v803
    %960 = vmatpush1.bf16.msra.mxu0 %v802
    %961 = vmatprep.subr.bf16.mxu0 %v807
    %962 = vmatpush1.bf16.msra.mxu0 %v806
    %963 = vmatprep.subr.bf16.mxu0 %v811
    %964 = vmatpush1.bf16.msra.mxu0 %v810
    %965 = vmatprep.subr.bf16.mxu0 %v815
    %966 = vmatpush1.bf16.msra.mxu0 %v814
    %967 = vmatprep.subr.bf16.mxu0 %v819
    %968 = vmatpush1.bf16.msra.mxu0 %v818
    %969 = vmatprep.subr.bf16.mxu0 %v823
    %970 = vmatpush1.bf16.msra.mxu0 %v822
    %971 = vmatprep.subr.bf16.mxu0 %v827
    %972 = vmatpush1.bf16.msra.mxu0 %v826
    %973 = vmatprep.subr.bf16.mxu0 %v831
    %974 = vmatpush1.bf16.msra.mxu0 %v830
    %975 = vmatprep.subr.bf16.mxu0 %v835
    %976 = vmatpush1.bf16.msra.mxu0 %v834
    %977 = vmatprep.subr.bf16.mxu0 %v839
    %978 = vmatpush1.bf16.msra.mxu0 %v838
    %979 = vmatprep.subr.bf16.mxu0 %v843
    %980 = vmatpush1.bf16.msra.mxu0 %v842
    %981 = vmatprep.mubr.bf16.mxu0 %v501
    %982 = vmatmul.mubr.bf16.gmra.mrb[0].mxu0 %v500
    %v983 = vpop.f32.mrb[0].mxu0
    %v984 = vadd.f32 %v579, %v983
    %v985 = vpop.f32.mrb[0].mxu0
    %v986 = vadd.f32 %v583, %v985
    %v987 = vpop.f32.mrb[0].mxu0
    %v988 = vpop.f32.mrb[0].mxu0
    %989 = vdwg.mxu0
    %v990 = vmax.f32 %v943, 0.0
    %v991 = vmax.f32 %v945, 0.0
    %v992 = vmax.f32 %v984, 0.0
    %v993 = vmax.f32 %v986, 0.0
    %v994 = vpack.c.bf16 %v990, %v990
    %v995 = vpack.c.bf16 %v991, %v991
    %v996 = vpack.c.bf16 %v992, %v992
    %v997 = vpack.c.bf16 %v993, %v993
    %v998 = vld [vmem:[#allocation9] sm:$0xf]
    %v999 = vld [vmem:[#allocation9 + $0x4] sm:$0xf]
    %v1000 = vld [vmem:[#allocation9 + $0x8] sm:$0xf]
    %v1001 = vld [vmem:[#allocation9 + $0xc] sm:$0xf]
    %v1002 = vld [vmem:[#allocation9 + $0x10] sm:$0xf]
    %v1003 = vld [vmem:[#allocation9 + $0x14] sm:$0xf]
    %v1004 = vld [vmem:[#allocation9 + $0x18] sm:$0xf]
    %v1005 = vld [vmem:[#allocation9 + $0x1c] sm:$0xf]
    %v1006 = vld [vmem:[#allocation9 + $0x20] sm:$0xf]
    %v1007 = vld [vmem:[#allocation9 + $0x24] sm:$0xf]
    %v1008 = vld [vmem:[#allocation9 + $0x28] sm:$0xf]
    %v1009 = vld [vmem:[#allocation9 + $0x2c] sm:$0xf]
    %v1010 = vld [vmem:[#allocation9 + $0x30] sm:$0xf]
    %v1011 = vld [vmem:[#allocation9 + $0x34] sm:$0xf]
    %v1012 = vld [vmem:[#allocation9 + $0x38] sm:$0xf]
    %v1013 = vld [vmem:[#allocation9 + $0x3c] sm:$0xf]
    %v1014 = vld [vmem:[#allocation9 + $0x40] sm:$0xf]
    %v1015 = vld [vmem:[#allocation9 + $0x44] sm:$0xf]
    %v1016 = vld [vmem:[#allocation9 + $0x48] sm:$0xf]
    %v1017 = vld [vmem:[#allocation9 + $0x4c] sm:$0xf]
    %v1018 = vld [vmem:[#allocation9 + $0x50] sm:$0xf]
    %v1019 = vld [vmem:[#allocation9 + $0x54] sm:$0xf]
    %v1020 = vld [vmem:[#allocation9 + $0x58] sm:$0xf]
    %v1021 = vld [vmem:[#allocation9 + $0x5c] sm:$0xf]
    %v1022 = vld [vmem:[#allocation9 + $0x60] sm:$0xf]
    %v1023 = vld [vmem:[#allocation9 + $0x64] sm:$0xf]
    %v1024 = vld [vmem:[#allocation9 + $0x68] sm:$0xf]
    %v1025 = vld [vmem:[#allocation9 + $0x6c] sm:$0xf]
    %v1026 = vld [vmem:[#allocation9 + $0x70] sm:$0xf]
    %v1027 = vld [vmem:[#allocation9 + $0x74] sm:$0xf]
    %v1028 = vld [vmem:[#allocation9 + $0x78] sm:$0xf]
    %v1029 = vld [vmem:[#allocation9 + $0x7c] sm:$0xf]
    %v1030 = vld [vmem:[#allocation9 + $0x80] sm:$0xf]
    %v1031 = vld [vmem:[#allocation9 + $0x84] sm:$0xf]
    %v1032 = vld [vmem:[#allocation9 + $0x88] sm:$0xf]
    %v1033 = vld [vmem:[#allocation9 + $0x8c] sm:$0xf]
    %v1034 = vld [vmem:[#allocation9 + $0x90] sm:$0xf]
    %v1035 = vld [vmem:[#allocation9 + $0x94] sm:$0xf]
    %v1036 = vld [vmem:[#allocation9 + $0x98] sm:$0xf]
    %v1037 = vld [vmem:[#allocation9 + $0x9c] sm:$0xf]
    %v1038 = vld [vmem:[#allocation9 + $0xa0] sm:$0xf]
    %v1039 = vld [vmem:[#allocation9 + $0xa4] sm:$0xf]
    %v1040 = vld [vmem:[#allocation9 + $0xa8] sm:$0xf]
    %v1041 = vld [vmem:[#allocation9 + $0xac] sm:$0xf]
    %v1042 = vld [vmem:[#allocation9 + $0xb0] sm:$0xf]
    %v1043 = vld [vmem:[#allocation9 + $0xb4] sm:$0xf]
    %v1044 = vld [vmem:[#allocation9 + $0xb8] sm:$0xf]
    %v1045 = vld [vmem:[#allocation9 + $0xbc] sm:$0xf]
    %v1046 = vld [vmem:[#allocation9 + $0xc0] sm:$0xf]
    %v1047 = vld [vmem:[#allocation9 + $0xc4] sm:$0xf]
    %v1048 = vld [vmem:[#allocation9 + $0xc8] sm:$0xf]
    %v1049 = vld [vmem:[#allocation9 + $0xcc] sm:$0xf]
    %v1050 = vld [vmem:[#allocation9 + $0xd0] sm:$0xf]
    %v1051 = vld [vmem:[#allocation9 + $0xd4] sm:$0xf]
    %v1052 = vld [vmem:[#allocation9 + $0xd8] sm:$0xf]
    %v1053 = vld [vmem:[#allocation9 + $0xdc] sm:$0xf]
    %v1054 = vld [vmem:[#allocation9 + $0xe0] sm:$0xf]
    %v1055 = vld [vmem:[#allocation9 + $0xe4] sm:$0xf]
    %v1056 = vld [vmem:[#allocation9 + $0xe8] sm:$0xf]
    %v1057 = vld [vmem:[#allocation9 + $0xec] sm:$0xf]
    %v1058 = vld [vmem:[#allocation9 + $0xf0] sm:$0xf]
    %v1059 = vld [vmem:[#allocation9 + $0xf4] sm:$0xf]
    %v1060 = vld [vmem:[#allocation9 + $0xf8] sm:$0xf]
    %v1061 = vld [vmem:[#allocation9 + $0xfc] sm:$0xf]
    %v1062 = vld [vmem:[%s8] sm:$0x1]
    %v1064 = vlaneseq
    %v1065 = vshrl.u32 %v1064, 7
    %v1066 = vsub.s32 0, %v1065
    %v1067 = vrot.slane %v1062, %v1066
    %v1133 = vunpack.c.l.b16 %v998
    %v1134 = vunpack.c.l.b16 %v999
    %v1135 = vunpack.c.l.b16 %v1000
    %v1136 = vunpack.c.l.b16 %v1001
    %v1137 = vunpack.c.l.b16 %v1002
    %v1138 = vunpack.c.l.b16 %v1003
    %v1139 = vunpack.c.l.b16 %v1004
    %v1140 = vunpack.c.l.b16 %v1005
    %v1141 = vunpack.c.l.b16 %v1006
    %v1142 = vunpack.c.l.b16 %v1007
    %v1143 = vunpack.c.l.b16 %v1008
    %v1144 = vunpack.c.l.b16 %v1009
    %v1145 = vunpack.c.l.b16 %v1010
    %v1146 = vunpack.c.l.b16 %v1011
    %v1147 = vunpack.c.l.b16 %v1012
    %v1148 = vunpack.c.l.b16 %v1013
    %v1149 = vunpack.c.l.b16 %v1014
    %v1150 = vunpack.c.l.b16 %v1015
    %v1151 = vunpack.c.l.b16 %v1016
    %v1152 = vunpack.c.l.b16 %v1017
    %v1153 = vunpack.c.l.b16 %v1018
    %v1154 = vunpack.c.l.b16 %v1019
    %v1155 = vunpack.c.l.b16 %v1020
    %v1156 = vunpack.c.l.b16 %v1021
    %v1157 = vunpack.c.l.b16 %v1022
    %v1158 = vunpack.c.l.b16 %v1023
    %v1159 = vunpack.c.l.b16 %v1024
    %v1160 = vunpack.c.l.b16 %v1025
    %v1161 = vunpack.c.l.b16 %v1026
    %v1162 = vunpack.c.l.b16 %v1027
    %v1163 = vunpack.c.l.b16 %v1028
    %v1164 = vunpack.c.l.b16 %v1029
    %v1165 = vunpack.c.l.b16 %v1030
    %v1166 = vunpack.c.l.b16 %v1031
    %v1167 = vunpack.c.l.b16 %v1032
    %v1168 = vunpack.c.l.b16 %v1033
    %v1169 = vunpack.c.l.b16 %v1034
    %v1170 = vunpack.c.l.b16 %v1035
    %v1171 = vunpack.c.l.b16 %v1036
    %v1172 = vunpack.c.l.b16 %v1037
    %v1173 = vunpack.c.l.b16 %v1038
    %v1174 = vunpack.c.l.b16 %v1039
    %v1175 = vunpack.c.l.b16 %v1040
    %v1176 = vunpack.c.l.b16 %v1041
    %v1177 = vunpack.c.l.b16 %v1042
    %v1178 = vunpack.c.l.b16 %v1043
    %v1179 = vunpack.c.l.b16 %v1044
    %v1180 = vunpack.c.l.b16 %v1045
    %v1181 = vunpack.c.l.b16 %v1046
    %v1182 = vunpack.c.l.b16 %v1047
    %v1183 = vunpack.c.l.b16 %v1048
    %v1184 = vunpack.c.l.b16 %v1049
    %v1185 = vunpack.c.l.b16 %v1050
    %v1186 = vunpack.c.l.b16 %v1051
    %v1187 = vunpack.c.l.b16 %v1052
    %v1188 = vunpack.c.l.b16 %v1053
    %v1189 = vunpack.c.l.b16 %v1054
    %v1190 = vunpack.c.l.b16 %v1055
    %v1191 = vunpack.c.l.b16 %v1056
    %v1192 = vunpack.c.l.b16 %v1057
    %v1193 = vunpack.c.l.b16 %v1058
    %v1194 = vunpack.c.l.b16 %v1059
    %v1195 = vunpack.c.l.b16 %v1060
    %v1196 = vunpack.c.l.b16 %v1061
    %v1197 = vpack.c.b16 %v1134, %v1133
    %v1198 = vpack.c.b16 %v1136, %v1135
    %v1199 = vpack.c.b16 %v1138, %v1137
    %v1200 = vpack.c.b16 %v1140, %v1139
    %v1201 = vpack.c.b16 %v1142, %v1141
    %v1202 = vpack.c.b16 %v1144, %v1143
    %v1203 = vpack.c.b16 %v1146, %v1145
    %v1204 = vpack.c.b16 %v1148, %v1147
    %v1205 = vpack.c.b16 %v1150, %v1149
    %v1206 = vpack.c.b16 %v1152, %v1151
    %v1207 = vpack.c.b16 %v1154, %v1153
    %v1208 = vpack.c.b16 %v1156, %v1155
    %v1209 = vpack.c.b16 %v1158, %v1157
    %v1210 = vpack.c.b16 %v1160, %v1159
    %v1211 = vpack.c.b16 %v1162, %v1161
    %v1212 = vpack.c.b16 %v1164, %v1163
    %v1213 = vpack.c.b16 %v1166, %v1165
    %v1214 = vpack.c.b16 %v1168, %v1167
    %v1215 = vpack.c.b16 %v1170, %v1169
    %v1216 = vpack.c.b16 %v1172, %v1171
    %v1217 = vpack.c.b16 %v1174, %v1173
    %v1218 = vpack.c.b16 %v1176, %v1175
    %v1219 = vpack.c.b16 %v1178, %v1177
    %v1220 = vpack.c.b16 %v1180, %v1179
    %v1221 = vpack.c.b16 %v1182, %v1181
    %v1222 = vpack.c.b16 %v1184, %v1183
    %v1223 = vpack.c.b16 %v1186, %v1185
    %v1224 = vpack.c.b16 %v1188, %v1187
    %v1225 = vpack.c.b16 %v1190, %v1189
    %v1226 = vpack.c.b16 %v1192, %v1191
    %v1227 = vpack.c.b16 %v1194, %v1193
    %v1228 = vpack.c.b16 %v1196, %v1195
    %1261 = vmatprep.subr.bf16.mxu0 0
    %1262 = vmatpush1.bf16.msra.mxu0 %v1197
    %1263 = vmatprep.subr.bf16.mxu0 0
    %1264 = vmatpush1.bf16.msra.mxu0 %v1198
    %1265 = vmatprep.subr.bf16.mxu0 0
    %1266 = vmatpush1.bf16.msra.mxu0 %v1199
    %1267 = vmatprep.subr.bf16.mxu0 0
    %1268 = vmatpush1.bf16.msra.mxu0 %v1200
    %1269 = vmatprep.subr.bf16.mxu0 0
    %1270 = vmatpush1.bf16.msra.mxu0 %v1201
    %1271 = vmatprep.subr.bf16.mxu0 0
    %1272 = vmatpush1.bf16.msra.mxu0 %v1202
    %1273 = vmatprep.subr.bf16.mxu0 0
    %1274 = vmatpush1.bf16.msra.mxu0 %v1203
    %1275 = vmatprep.subr.bf16.mxu0 0
    %1276 = vmatpush1.bf16.msra.mxu0 %v1204
    %1277 = vmatprep.subr.bf16.mxu0 0
    %1278 = vmatpush1.bf16.msra.mxu0 %v1205
    %1279 = vmatprep.subr.bf16.mxu0 0
    %1280 = vmatpush1.bf16.msra.mxu0 %v1206
    %1281 = vmatprep.subr.bf16.mxu0 0
    %1282 = vmatpush1.bf16.msra.mxu0 %v1207
    %1283 = vmatprep.subr.bf16.mxu0 0
    %1284 = vmatpush1.bf16.msra.mxu0 %v1208
    %1285 = vmatprep.subr.bf16.mxu0 0
    %1286 = vmatpush1.bf16.msra.mxu0 %v1209
    %1287 = vmatprep.subr.bf16.mxu0 0
    %1288 = vmatpush1.bf16.msra.mxu0 %v1210
    %1289 = vmatprep.subr.bf16.mxu0 0
    %1290 = vmatpush1.bf16.msra.mxu0 %v1211
    %1291 = vmatprep.subr.bf16.mxu0 0
    %1292 = vmatpush1.bf16.msra.mxu0 %v1212
    %1293 = vmatprep.mubr.bf16.mxu0 %v995
    %1294 = vmatmul.mubr.bf16.gmra.mrb[0].mxu0 %v994
    %v1295 = vpop.f32.mrb[0].mxu0
    %v1296 = vadd.f32 %v1067, %v1295
    %v1297 = vpop.f32.mrb[0].mxu0
    %v1298 = vpop.f32.mrb[0].mxu0
    %v1299 = vpop.f32.mrb[0].mxu0
    %1300 = vdwg.mxu0
    %1301 = vmatprep.subr.bf16.mxu0 0
    %1302 = vmatpush1.bf16.msra.mxu0 %v1213
    %1303 = vmatprep.subr.bf16.mxu0 0
    %1304 = vmatpush1.bf16.msra.mxu0 %v1214
    %1305 = vmatprep.subr.bf16.mxu0 0
    %1306 = vmatpush1.bf16.msra.mxu0 %v1215
    %1307 = vmatprep.subr.bf16.mxu0 0
    %1308 = vmatpush1.bf16.msra.mxu0 %v1216
    %1309 = vmatprep.subr.bf16.mxu0 0
    %1310 = vmatpush1.bf16.msra.mxu0 %v1217
    %1311 = vmatprep.subr.bf16.mxu0 0
    %1312 = vmatpush1.bf16.msra.mxu0 %v1218
    %1313 = vmatprep.subr.bf16.mxu0 0
    %1314 = vmatpush1.bf16.msra.mxu0 %v1219
    %1315 = vmatprep.subr.bf16.mxu0 0
    %1316 = vmatpush1.bf16.msra.mxu0 %v1220
    %1317 = vmatprep.subr.bf16.mxu0 0
    %1318 = vmatpush1.bf16.msra.mxu0 %v1221
    %1319 = vmatprep.subr.bf16.mxu0 0
    %1320 = vmatpush1.bf16.msra.mxu0 %v1222
    %1321 = vmatprep.subr.bf16.mxu0 0
    %1322 = vmatpush1.bf16.msra.mxu0 %v1223
    %1323 = vmatprep.subr.bf16.mxu0 0
    %1324 = vmatpush1.bf16.msra.mxu0 %v1224
    %1325 = vmatprep.subr.bf16.mxu0 0
    %1326 = vmatpush1.bf16.msra.mxu0 %v1225
    %1327 = vmatprep.subr.bf16.mxu0 0
    %1328 = vmatpush1.bf16.msra.mxu0 %v1226
    %1329 = vmatprep.subr.bf16.mxu0 0
    %1330 = vmatpush1.bf16.msra.mxu0 %v1227
    %1331 = vmatprep.subr.bf16.mxu0 0
    %1332 = vmatpush1.bf16.msra.mxu0 %v1228
    %1333 = vmatprep.mubr.bf16.mxu0 %v997
    %1334 = vmatmul.mubr.bf16.gmra.mrb[0].mxu0 %v996
    %v1335 = vpop.f32.mrb[0].mxu0
    %v1336 = vadd.f32 %v1296, %v1335
    %v1337 = vpop.f32.mrb[0].mxu0
    %v1338 = vpop.f32.mrb[0].mxu0
    %v1339 = vpop.f32.mrb[0].mxu0
    %1340 = vdwg.mxu0
    %1341 = vadd.xlane.f32.xlu0 %v1336
    %v1342 = vpop.xlane.xlu0 %1341
    %v1343 = vsub.f32 %v1342, %v1336
    %v1344 = vmul.f32 %v1343, 0.25
    %1346 = vset.pattern.permute.xlu0 0
    %1347 = vperm.xlu0 %1346, %v1344
    %v1348 = vpop.permute.xlu0 %1347
    %v1350 = vsub.f32 %v1336, %v1348
    %1352 = vset.pattern.permute.xlu0 0
    %1353 = vperm.xlu0 %1352, %v1336
    %v1354 = vpop.permute.xlu0 %1353
    %v1356 = vadd.f32 %v1354, %v1350
    %1358 = vrot.lane.b32.xlu0 %v1356, 127
    %v1359 = vpop.permute.xlu0 %1358
    %vm1361 = vcmask 31744
    %1362 = vst.msk [vmem:[%s9] sm:$0xff] %vm1361, %v1359
    // Predicated region
    $region58: #{tpu_custom_call.1} parent=1 // pred_check
      _
    $region59: #{tpu_custom_call.1} parent=1 // pred_check_branch
      %1364 = sbr.rel (0) target = $region61
    $region60: #{tpu_custom_call.1} parent=1 // pred_region
      _
    $region61: #{tpu_custom_call.1} parent=1 // pred_fallthru
      _
    // Predicated region
    $region62: #{tpu_custom_call.1} parent=1 // pred_check
      _
    $region63: #{tpu_custom_call.1} parent=1 // pred_check_branch
      %1366 = sbr.rel (0) target = $region65
    $region64: #{tpu_custom_call.1} parent=1 // pred_region
      _
    $region65: #{tpu_custom_call.1} parent=1 // pred_fallthru
      _
    %1367 = vsyncpa [#allocation3], 1
    %1368 = vsyncpa [#allocation5], 1
    %1369 = vsyncpa [#allocation8], 1

</llo_original>
